<compile_context>
chip_gen: v7x
topology: tpu7x:2x2x1
jax: 0.10.0
libtpu: 0.0.40
codegen_flags: <defaults>
</compile_context>

<pallas_src>
import functools

import jax
import jax.numpy as jnp
from jax.experimental import pallas as pl
from jax.experimental.pallas import tpu as pltpu


def _rmsnorm_kernel(x_ref, w_ref, o_ref, *, eps):
    # x_ref: (TILE_ROWS, DIM), w_ref: (1, DIM) already in output dtype.
    x = x_ref[...].astype(jnp.float32)                 # x.float()
    ms = jnp.mean(x * x, axis=-1, keepdims=True)       # x.pow(2).mean(-1, keepdim=True)
    inv = jax.lax.rsqrt(ms + eps)                      # torch.rsqrt(... + eps)  (EUP)
    normed = (x * inv).astype(o_ref.dtype)             # .type_as(x)
    o_ref[...] = normed * w_ref[...]                   # * weight


def _tpu_vmem_and_cores():
    """Per-core VMEM bytes and TensorCores-per-chip (heuristic, safe fallback)."""
    vmem_cap = 64 * 1024 * 1024  # conservative default = v7x per-TC VMEM
    try:
        vmem_cap = int(pltpu.get_tpu_info().vmem_capacity_bytes)
    except Exception:
        pass
    # 64-MiB-per-core parts (v7x) have 2 TCs per chip; 128-MiB parts (v5e/v6e) have 1.
    n_cores = 2 if vmem_cap <= 64 * 1024 * 1024 else 1
    return vmem_cap, n_cores


def _snap_to_divisor(rows, tile, sublane):
    """Prefer an even split (no partial last block) if a sublane-aligned divisor
    of `rows` exists within [tile//2, tile]; otherwise keep `tile` and let the
    last grid step be a partial block (rows are independent, so that's safe)."""
    if rows % sublane != 0:
        return tile
    lo = max(tile // 2, sublane)
    for t in range(tile, lo - 1, -sublane):
        if t > 0 and rows % t == 0:
            return t
    return tile


def _pick_tile_rows(rows, dim, itemsize):
    # Sublane alignment per dtype width: f32 -> 8, bf16 -> 16, int8/fp8 -> 32.
    sublane = {4: 8, 2: 16, 1: 32}.get(itemsize, 8)
    row_bytes = dim * itemsize
    vmem_cap, n_cores = _tpu_vmem_and_cores()

    # Per-row VMEM footprint of one grid step:
    #   2x double-buffered input block + 2x double-buffered output block
    #   + the f32 intermediates the body materializes (x.astype(f32), x*x).
    f32_copies = 2 if itemsize < 4 else 1
    per_row = 4 * row_bytes + f32_copies * dim * 4

    # Spend ~60% of the per-generation VMEM on this footprint; the rest is
    # headroom for the compiler (spill, weight block, misc scratch).
    budget = int(vmem_cap * 0.6)
    max_by_vmem = max(budget // per_row, sublane)

    # Grid-step floor: 2-TC chips (v7x) want >= 8 steps so both cores get work;
    # single-TC chips only need enough steps for double-buffering to overlap.
    min_steps = 8 if n_cores >= 2 else 3
    max_by_grid = max(rows // min_steps, sublane)

    # Cap the input block at ~8 MiB: big enough to amortize the ~0.35 us/step
    # pipeline overhead, small enough to keep several steps in flight.
    max_by_target = max((8 * 1024 * 1024) // row_bytes, sublane)

    tile = min(max_by_vmem, max_by_grid, max_by_target)
    tile = max((tile // sublane) * sublane, sublane)
    return _snap_to_divisor(rows, tile, sublane)


def rmsnorm(x, weight, eps=1e-6, tile_rows=None):
    """x: (..., dim); weight: (dim,). Returns RMSNorm(x) * weight (PyTorch semantics)."""
    orig_shape = x.shape
    dim = orig_shape[-1]
    assert dim % 128 == 0, "dim must be a multiple of 128 for TPU lane tiling"

    x2d = x.reshape(-1, dim)
    rows = x2d.shape[0]
    itemsize = jnp.dtype(x.dtype).itemsize

    if tile_rows is None:
        tile_rows = _pick_tile_rows(rows, dim, itemsize)

    # No padding: grid covers rows with a possibly-partial last block. Per-row
    # reduction means OOB garbage rows cannot contaminate valid rows, and OOB
    # writes are dropped.
    num_tiles = pl.cdiv(rows, tile_rows)

    # Pre-cast weight once; keeps the (1, dim) operand VMEM-resident with no
    # per-step cast. (Semantics differ from PyTorch only if weight dtype != x dtype.)
    w2d = weight.astype(x.dtype).reshape(1, dim)

    block_bytes = tile_rows * dim * itemsize
    f32_copies = 2 if itemsize < 4 else 1
    scratch_bytes = f32_copies * tile_rows * dim * 4
    vmem_cap, _ = _tpu_vmem_and_cores()
    # 2 buffers x (in block + out block) + f32 working set + weight + headroom.
    vmem_limit = 4 * block_bytes + scratch_bytes + 2 * dim * itemsize + (4 << 20)
    vmem_limit = int(min(max(vmem_limit, 16 << 20), int(vmem_cap * 0.9)))

    cost = pl.CostEstimate(
        flops=4 * rows * dim,
        transcendentals=rows,
        bytes_accessed=2 * rows * dim * itemsize + dim * itemsize,
    )

    out = pl.pallas_call(
        functools.partial(_rmsnorm_kernel, eps=eps),
        out_shape=jax.ShapeDtypeStruct((rows, dim), x.dtype),
        grid_spec=pltpu.PrefetchScalarGridSpec(
            num_scalar_prefetch=0,
            grid=(num_tiles,),
            in_specs=[
                pl.BlockSpec((tile_rows, dim), lambda i: (i, 0)),
                pl.BlockSpec((1, dim), lambda i: (0, 0)),
            ],
            out_specs=pl.BlockSpec((tile_rows, dim), lambda i: (i, 0)),
        ),
        compiler_params=pltpu.CompilerParams(
            dimension_semantics=("parallel",),
            vmem_limit_bytes=vmem_limit,
        ),
        cost_estimate=cost,
    )(x2d, w2d)

    return out.reshape(orig_shape)


def rmsnorm_ref(x, weight, eps=1e-6):
    xf = x.astype(jnp.float32)
    inv = jax.lax.rsqrt(jnp.mean(xf * xf, axis=-1, keepdims=True) + eps)
    return (xf * inv).astype(x.dtype) * weight.astype(x.dtype)


if __name__ == "__main__":
    # Shapes from the module spec: x = (10, 256, 512), dim = 512.
    batch, seq, dim = 10, 256, 512
    key = jax.random.PRNGKey(0)
    kx, kw = jax.random.split(key)
    x = jax.random.normal(kx, (batch, seq, dim), dtype=jnp.float32)

    # Module-faithful init: weight = ones(dim).
    weight = jnp.ones((dim,), dtype=jnp.float32)

    out = rmsnorm(x, weight, eps=1e-6)
    out = jax.block_until_ready(out)
    ref = rmsnorm_ref(x, weight, eps=1e-6)
    assert out.shape == x.shape and out.dtype == x.dtype
    assert jnp.allclose(out, ref, atol=1e-5, rtol=1e-5), "mismatch vs reference (ones weight)"

    # Extra check: non-trivial weight + row count that exercises the partial-last-block path.
    w2 = 1.0 + 0.1 * jax.random.normal(kw, (dim,), dtype=jnp.float32)
    x2 = jax.random.normal(kw, (3, 7, dim), dtype=jnp.float32)   # rows=21, forces a partial block
    out2 = jax.block_until_ready(rmsnorm(x2, w2, eps=1e-6))
    ref2 = rmsnorm_ref(x2, w2, eps=1e-6)
    assert out2.shape == x2.shape
    assert jnp.allclose(out2, ref2, atol=1e-5, rtol=1e-5), "mismatch vs reference (partial block)"

    print("KERNEL_OK")
</pallas_src>

<mosaic_0001>
module attributes {stable_mosaic.version = 11 : i64} {
  func.func @_rmsnorm_kernel(%arg0: i32, %arg1: memref<320x512xf32, #tpu.memory_space<vmem>>, %arg2: memref<1x512xf32, #tpu.memory_space<vmem>>, %arg3: memref<320x512xf32, #tpu.memory_space<vmem>>) attributes {dimension_semantics = [#tpu.dimension_semantics<parallel>], iteration_bounds = array<i64: 8>, scalar_prefetch = 0 : i64, scratch_operands = 0 : i64, tpu.core_type = #tpu.core_type<tc>, window_params = [{transform_indices = @transform_0, window_bounds = array<i64: 320, 512>}, {pipeline_mode = #tpu.pipeline_mode<synchronous>, transform_indices = @transform_1, window_bounds = array<i64: 1, 512>}, {transform_indices = @transform_2, window_bounds = array<i64: 320, 512>}]} {
    %c0 = arith.constant 0 : index
    %c0_0 = arith.constant 0 : index
    %0 = vector.load %arg1[%c0, %c0_0] : memref<320x512xf32, #tpu.memory_space<vmem>>, vector<320x512xf32>
    %1 = arith.mulf %0, %0 : vector<320x512xf32>
    %cst = arith.constant dense<0.000000e+00> : vector<320xf32>
    %2 = vector.multi_reduction <add>, %1, %cst [1] : vector<320x512xf32> to vector<320xf32>
    %3 = vector.shape_cast %2 : vector<320xf32> to vector<320x1xf32>
    %cst_1 = arith.constant 5.120000e+02 : f32
    %4 = vector.broadcast %cst_1 : f32 to vector<320x1xf32>
    %5 = arith.divf %3, %4 : vector<320x1xf32>
    %cst_2 = arith.constant 9.99999997E-7 : f32
    %6 = vector.broadcast %cst_2 : f32 to vector<320x1xf32>
    %7 = arith.addf %5, %6 : vector<320x1xf32>
    %8 = math.rsqrt %7 : vector<320x1xf32>
    %9 = vector.broadcast %8 : vector<320x1xf32> to vector<320x512xf32>
    %10 = arith.mulf %0, %9 : vector<320x512xf32>
    %c0_3 = arith.constant 0 : index
    %c0_4 = arith.constant 0 : index
    %11 = vector.load %arg2[%c0_3, %c0_4] : memref<1x512xf32, #tpu.memory_space<vmem>>, vector<1x512xf32>
    %12 = vector.broadcast %11 : vector<1x512xf32> to vector<320x512xf32>
    %13 = arith.mulf %10, %12 : vector<320x512xf32>
    %c0_5 = arith.constant 0 : index
    %c0_6 = arith.constant 0 : index
    %14 = vector.load %arg3[%c0_5, %c0_6] : memref<320x512xf32, #tpu.memory_space<vmem>>, vector<320x512xf32>
    tpu.vector_store %arg3[%c0_5, %c0_6], %13 {strides = array<i32>} : memref<320x512xf32, #tpu.memory_space<vmem>>, vector<320x512xf32>,
    return
  }
  func.func @transform_0(%arg0: i32) -> (i32, i32) {
    %c0_i32 = arith.constant 0 : i32
    %c0_i32_0 = arith.constant 0 : i32
    return %arg0, %c0_i32 : i32, i32
  }
  func.func @transform_1(%arg0: i32) -> (i32, i32) {
    %c0_i32 = arith.constant 0 : i32
    %c0_i32_0 = arith.constant 0 : i32
    %c0_i32_1 = arith.constant 0 : i32
    return %c0_i32, %c0_i32_0 : i32, i32
  }
  func.func @transform_2(%arg0: i32) -> (i32, i32) {
    %c0_i32 = arith.constant 0 : i32
    %c0_i32_0 = arith.constant 0 : i32
    return %arg0, %c0_i32 : i32, i32
  }
}

</mosaic_0001>

<llo_original>
// kernel: tpu_custom_call.1
$region0: #{tpu_custom_call.1}
  #allocation0 [shape = 'u32[]', space=smem, size = 0x4, offset = 0x4, fixed_abs, tag = 'smem constant byte address 0x4 - core index']
  #allocation1 [shape = 'u32[144,128]{1,0:T(1,128)}', space=vmem, size = 0x12000, scoped, tag = 'internal scratch']
  %s0 = inlined_call_operand.hbm [shape: f32[2560,512], index: 0, kind: input, shape index: {}]
  %s1 = inlined_call_operand.hbm [shape: f32[1,512], index: 1, kind: input, shape index: {}]
  %s2 = inlined_call_operand.hbm [shape: f32[2560,512], index: 2, kind: output, shape index: {}]
  %s3 = sld [smem:[#allocation0]]
  $region49: #{tpu_custom_call.1} parent=0
    _
  %s5 = ssub.s32 1, %s3
  %s6 = scalar_select 0, %s5, %s3
  $region1: #{tpu_custom_call.1} parent=0
    #allocation2 [shape = 'u8[1310720]{0}', space=vmem, size = 0x140000, scoped, tag = 'input window, operand 0']
    #allocation3 [shape = 's32[2]{0}', space=sflag, size = 0x8, scoped, tag = 'scoped memory for tpu_custom_call.1']
    #allocation4 [shape = 's32[2]{0}', space=sflag, size = 0x8, scoped, tag = 'scoped memory for tpu_custom_call.1']
    #allocation5 [shape = 'u8[2048]{0}', space=vmem, size = 0x800, scoped, tag = 'input window, operand 1, single buffered']
    #allocation6 [shape = 's32[1]{0}', space=sflag, size = 0x4, scoped, tag = 'scoped memory for tpu_custom_call.1']
    #allocation7 [shape = 'u8[1310720]{0}', space=vmem, size = 0x140000, scoped, tag = 'output window, operand 0']
    %7 = vsyncpa [#allocation3], 0
    %s8 = scalar_lea.sflag [#allocation3], 1
    %9 = vsyncpa %s8, 0
    %10 = vsyncpa [#allocation6], 0
    %11 = vsyncpa [#allocation4], 0
    %s12 = scalar_lea.sflag [#allocation4], 1
    %13 = vsyncpa %s12, 0
    loop: start=0, step=1, limit=10
    $region2: #{tpu_custom_call.1} parent=1 // loop_pre_header
      _
    $region3: #{tpu_custom_call.1} parent=1 // loop_header
      %s15 = sphi 0, %s19
      %p16 = scmp.ge.s32.totalorder %s15, 10
      %s25 = sphi 0, %s27
      %s28 = sphi 0, %s25
      %s29 = sphi 0, %s28
      %s45 = sphi 0, %s29
      %s49 = sphi 0, %s49
      %s51 = sphi 0, %s49
      %s52 = sphi 0, %s51
      %s66 = sphi 0, %s52
      %s72 = sphi 0, %s74
      %s75 = sphi 0, %s72
      %s76 = sphi 0, %s75
      %s92 = sphi 0, %s76
    $region4: #{tpu_custom_call.1} parent=1 // loop_header_branch
      %18 = sbr.rel (%p16) target = $region8
    $region5: #{tpu_custom_call.1} parent=1 // loop_body
      %s20 = ssub.s32 %s15, 1
      %s21 = ssub.s32 %s15, 2
      %s22 = sadd.s32 %s15, 1
      %s23 = ssub.s32 %s15, %s22
      %p24 = scmp.eq.s32.totalorder %s23, 0
      %s26 = sadd.s32 %s25, 1
      %s27 = scalar_select %p24, %s25, %s26
      %p30 = pneg %p24
      %p31 = scmp.eq.s32.totalorder %s15, 7
      %p32 = por %p30, %p31
      %p33 = scmp.ne.s32.totalorder %s25, %s28
      %p34 = scmp.eq.s32.totalorder %s15, 0
      %p35 = por %p33, %p34
      %p36 = scmp.ne.s32.totalorder %s25, %s28
      %p37 = scmp.eq.s32.totalorder %s20, 7
      %p38 = por %p36, %p37
      %p39 = scmp.ne.s32.totalorder %s28, %s29
      %p40 = scmp.eq.s32.totalorder %s20, 0
      %p41 = por %p39, %p40
      %p42 = scmp.ne.s32.totalorder %s28, %s29
      %p43 = scmp.eq.s32.totalorder %s21, 7
      %p44 = por %p42, %p43
      %p46 = scmp.ne.s32.totalorder %s29, %s45
      %p47 = scmp.eq.s32.totalorder %s21, 0
      %p48 = por %p46, %p47
      %s50 = sadd.s32 %s49, 1
      %p53 = scmp.eq.s32.totalorder %s15, 7
      %p54 = scmp.ne.s32.totalorder %s49, %s51
      %p55 = scmp.eq.s32.totalorder %s15, 0
      %p56 = por %p54, %p55
      %p57 = scmp.ne.s32.totalorder %s49, %s51
      %p58 = scmp.eq.s32.totalorder %s20, 7
      %p59 = por %p57, %p58
      %p60 = scmp.ne.s32.totalorder %s51, %s52
      %p61 = scmp.eq.s32.totalorder %s20, 0
      %p62 = por %p60, %p61
      %p63 = scmp.ne.s32.totalorder %s51, %s52
      %p64 = scmp.eq.s32.totalorder %s21, 7
      %p65 = por %p63, %p64
      %p67 = scmp.ne.s32.totalorder %s52, %s66
      %p68 = scmp.eq.s32.totalorder %s21, 0
      %p69 = por %p67, %p68
      %s70 = ssub.s32 %s15, %s22
      %p71 = scmp.eq.s32.totalorder %s70, 0
      %s73 = sadd.s32 %s72, 1
      %s74 = scalar_select %p71, %s72, %s73
      %p77 = pneg %p71
      %p78 = scmp.eq.s32.totalorder %s15, 7
      %p79 = por %p77, %p78
      %p80 = scmp.ne.s32.totalorder %s72, %s75
      %p81 = scmp.eq.s32.totalorder %s15, 0
      %p82 = por %p80, %p81
      %p83 = scmp.ne.s32.totalorder %s72, %s75
      %p84 = scmp.eq.s32.totalorder %s20, 7
      %p85 = por %p83, %p84
      %p86 = scmp.ne.s32.totalorder %s75, %s76
      %p87 = scmp.eq.s32.totalorder %s20, 0
      %p88 = por %p86, %p87
      %p89 = scmp.ne.s32.totalorder %s75, %s76
      %p90 = scmp.eq.s32.totalorder %s21, 7
      %p91 = por %p89, %p90
      %p93 = scmp.ne.s32.totalorder %s76, %s92
      %p94 = scmp.eq.s32.totalorder %s21, 0
      %p95 = por %p93, %p94
      %p96 = scmp.le.s32.totalorder 1, %s15
      %p97 = scmp.lt.s32.totalorder %s15, 9
      %p98 = pnand %p96, %p97
      %p99 = pneg %p98
      // Predicated region
      $region9: #{tpu_custom_call.1} parent=5 // pred_check
        _
      $region10: #{tpu_custom_call.1} parent=5 // pred_check_branch
        %101 = sbr.rel (%p98) target = $region12
      $region11: #{tpu_custom_call.1} parent=5 // pred_region
        %s102 = ssub.s32 %s15, 1
        // Predicated region
        $region13: #{tpu_custom_call.1} parent=11 // pred_check
          %p103 = pneg %p62
        $region14: #{tpu_custom_call.1} parent=11 // pred_check_branch
          %105 = sbr.rel (%p103) target = $region16
        $region15: #{tpu_custom_call.1} parent=11 // pred_region
          %s107 = ssub.s32 64, 64
          %108 = vsyncadd [#allocation6], %s107
          %s110 = sshll.u32 [#allocation5], 4
          %s111 = int_to_ptr.vmem [resolvable:$true] %s110
          %113 = dma.hbm_to_vmem [thread:$0]  %s1, 64, %s111, [#allocation6]
        $region16: #{tpu_custom_call.1} parent=11 // pred_fallthru
          _
      $region12: #{tpu_custom_call.1} parent=5 // pred_fallthru
        _
      %p114 = scmp.lt.s32.totalorder %s15, 8
      // Predicated region
      $region17: #{tpu_custom_call.1} parent=5 // pred_check
        %p115 = pneg %p114
      $region18: #{tpu_custom_call.1} parent=5 // pred_check_branch
        %117 = sbr.rel (%p115) target = $region20
      $region19: #{tpu_custom_call.1} parent=5 // pred_region
        // Predicated region
        $region21: #{tpu_custom_call.1} parent=19 // pred_check
          %p118 = pneg %p35
        $region22: #{tpu_custom_call.1} parent=19 // pred_check_branch
          %120 = sbr.rel (%p118) target = $region24
        $region23: #{tpu_custom_call.1} parent=19 // pred_region
          %s121 = sand.u32 %s25, 1
          %s122 = scalar_lea.sflag [#allocation3], %s121
          %s123 = sand.u32 %s25, 1
          %s124 = smul.addr %s123, 1280
          %s125 = scalar_lea.vmem [#allocation2], %s124
          %s126 = smul.u32 40, %s15
          %s128 = ssub.s32 20480, 20480
          %129 = vsyncadd %s122, %s128
          %s130 = smul.addr %s126, 4
          %s131 = smul.addr %s130, 128
          %s132 = scalar_lea.hbm %s0, %s131
          %s133 = sshll.u32 %s125, 4
          %s134 = int_to_ptr.vmem [resolvable:$true] %s133
          %139 = dma.hbm_to_vmem [thread:$0]  %s132, 20480, %s134, %s122, 512, 512, 32
        $region24: #{tpu_custom_call.1} parent=19 // pred_fallthru
          _
      $region20: #{tpu_custom_call.1} parent=5 // pred_fallthru
        _
      %p140 = scmp.le.s32.totalorder 1, %s15
      %p141 = scmp.lt.s32.totalorder %s15, 9
      %p142 = pnand %p140, %p141
      %p143 = pneg %p142
      // Predicated region
      $region25: #{tpu_custom_call.1} parent=5 // pred_check
        _
      $region26: #{tpu_custom_call.1} parent=5 // pred_check_branch
        %145 = sbr.rel (%p142) target = $region28
      $region27: #{tpu_custom_call.1} parent=5 // pred_region
        %s146 = ssub.s32 %s15, 1
        %s147 = sand.u32 %s28, 1
        %s148 = scalar_lea.sflag [#allocation3], %s147
        %s149 = sand.u32 %s28, 1
        %s150 = smul.addr %s149, 1280
        %s151 = scalar_lea.vmem [#allocation2], %s150
        // Predicated region
        $region29: #{tpu_custom_call.1} parent=27 // pred_check
          %p152 = pneg %p41
        $region30: #{tpu_custom_call.1} parent=27 // pred_check_branch
          %154 = sbr.rel (%p152) target = $region32
        $region31: #{tpu_custom_call.1} parent=27 // pred_region
          %155 = dma.done %s148, 20480
        $region32: #{tpu_custom_call.1} parent=27 // pred_fallthru
          _
        // Predicated region
        $region33: #{tpu_custom_call.1} parent=27 // pred_check
          %p156 = pneg %p62
        $region34: #{tpu_custom_call.1} parent=27 // pred_check_branch
          %158 = sbr.rel (%p156) target = $region36
        $region35: #{tpu_custom_call.1} parent=27 // pred_region
          %159 = dma.done [#allocation6], 64
        $region36: #{tpu_custom_call.1} parent=27 // pred_fallthru
          _
        %s160 = sand.u32 %s28, 1
        %s161 = scalar_lea.sflag [#allocation3], %s160
        %s162 = sand.u32 %s28, 1
        %s163 = smul.addr %s162, 1280
        %s164 = scalar_lea.vmem [#allocation2], %s163
        %p165 = pneg %p41
        %p166 = pneg %p38
        %p167 = pneg %p62
        %p168 = pneg %p59
        %p169 = pneg %p88
        %p170 = pneg %p85
        %s171 = sand.u32 %s75, 1
        %s172 = scalar_lea.sflag [#allocation4], %s171
        %s173 = sand.u32 %s75, 1
        %s174 = smul.addr %s173, 1280
        %s175 = scalar_lea.vmem [#allocation7], %s174
        %s176 = smul.u32 40, %s20
        %s177 = smul.u32 40, %s20
        %v178 = vld [vmem:[%s151] sm:$0xff]
        %v179 = vld [vmem:[%s151 + $0x8] sm:$0xff]
        %v180 = vld [vmem:[%s151 + $0x10] sm:$0xff]
        %v181 = vld [vmem:[%s151 + $0x18] sm:$0xff]
        %v182 = vld [vmem:[%s151 + $0x20] sm:$0xff]
        %v183 = vld [vmem:[%s151 + $0x28] sm:$0xff]
        %v184 = vld [vmem:[%s151 + $0x30] sm:$0xff]
        %v185 = vld [vmem:[%s151 + $0x38] sm:$0xff]
        %v186 = vld [vmem:[%s151 + $0x40] sm:$0xff]
        %v187 = vld [vmem:[%s151 + $0x48] sm:$0xff]
        %v188 = vld [vmem:[%s151 + $0x50] sm:$0xff]
        %v189 = vld [vmem:[%s151 + $0x58] sm:$0xff]
        %v190 = vld [vmem:[%s151 + $0x60] sm:$0xff]
        %v191 = vld [vmem:[%s151 + $0x68] sm:$0xff]
        %v192 = vld [vmem:[%s151 + $0x70] sm:$0xff]
        %v193 = vld [vmem:[%s151 + $0x78] sm:$0xff]
        %v194 = vld [vmem:[%s151 + $0x80] sm:$0xff]
        %v195 = vld [vmem:[%s151 + $0x88] sm:$0xff]
        %v196 = vld [vmem:[%s151 + $0x90] sm:$0xff]
        %v197 = vld [vmem:[%s151 + $0x98] sm:$0xff]
        %v198 = vld [vmem:[%s151 + $0xa0] sm:$0xff]
        %v199 = vld [vmem:[%s151 + $0xa8] sm:$0xff]
        %v200 = vld [vmem:[%s151 + $0xb0] sm:$0xff]
        %v201 = vld [vmem:[%s151 + $0xb8] sm:$0xff]
        %v202 = vld [vmem:[%s151 + $0xc0] sm:$0xff]
        %v203 = vld [vmem:[%s151 + $0xc8] sm:$0xff]
        %v204 = vld [vmem:[%s151 + $0xd0] sm:$0xff]
        %v205 = vld [vmem:[%s151 + $0xd8] sm:$0xff]
        %v206 = vld [vmem:[%s151 + $0xe0] sm:$0xff]
        %v207 = vld [vmem:[%s151 + $0xe8] sm:$0xff]
        %v208 = vld [vmem:[%s151 + $0xf0] sm:$0xff]
        %v209 = vld [vmem:[%s151 + $0xf8] sm:$0xff]
        %v210 = vld [vmem:[%s151 + $0x100] sm:$0xff]
        %v211 = vld [vmem:[%s151 + $0x108] sm:$0xff]
        %v212 = vld [vmem:[%s151 + $0x110] sm:$0xff]
        %v213 = vld [vmem:[%s151 + $0x118] sm:$0xff]
        %v214 = vld [vmem:[%s151 + $0x120] sm:$0xff]
        %v215 = vld [vmem:[%s151 + $0x128] sm:$0xff]
        %v216 = vld [vmem:[%s151 + $0x130] sm:$0xff]
        %v217 = vld [vmem:[%s151 + $0x138] sm:$0xff]
        %v218 = vld [vmem:[%s151 + $0x140] sm:$0xff]
        %v219 = vld [vmem:[%s151 + $0x148] sm:$0xff]
        %v220 = vld [vmem:[%s151 + $0x150] sm:$0xff]
        %v221 = vld [vmem:[%s151 + $0x158] sm:$0xff]
        %v222 = vld [vmem:[%s151 + $0x160] sm:$0xff]
        %v223 = vld [vmem:[%s151 + $0x168] sm:$0xff]
        %v224 = vld [vmem:[%s151 + $0x170] sm:$0xff]
        %v225 = vld [vmem:[%s151 + $0x178] sm:$0xff]
        %v226 = vld [vmem:[%s151 + $0x180] sm:$0xff]
        %v227 = vld [vmem:[%s151 + $0x188] sm:$0xff]
        %v228 = vld [vmem:[%s151 + $0x190] sm:$0xff]
        %v229 = vld [vmem:[%s151 + $0x198] sm:$0xff]
        %v230 = vld [vmem:[%s151 + $0x1a0] sm:$0xff]
        %v231 = vld [vmem:[%s151 + $0x1a8] sm:$0xff]
        %v232 = vld [vmem:[%s151 + $0x1b0] sm:$0xff]
        %v233 = vld [vmem:[%s151 + $0x1b8] sm:$0xff]
        %v234 = vld [vmem:[%s151 + $0x1c0] sm:$0xff]
        %v235 = vld [vmem:[%s151 + $0x1c8] sm:$0xff]
        %v236 = vld [vmem:[%s151 + $0x1d0] sm:$0xff]
        %v237 = vld [vmem:[%s151 + $0x1d8] sm:$0xff]
        %v238 = vld [vmem:[%s151 + $0x1e0] sm:$0xff]
        %v239 = vld [vmem:[%s151 + $0x1e8] sm:$0xff]
        %v240 = vld [vmem:[%s151 + $0x1f0] sm:$0xff]
        %v241 = vld [vmem:[%s151 + $0x1f8] sm:$0xff]
        %v242 = vld [vmem:[%s151 + $0x200] sm:$0xff]
        %v243 = vld [vmem:[%s151 + $0x208] sm:$0xff]
        %v244 = vld [vmem:[%s151 + $0x210] sm:$0xff]
        %v245 = vld [vmem:[%s151 + $0x218] sm:$0xff]
        %v246 = vld [vmem:[%s151 + $0x220] sm:$0xff]
        %v247 = vld [vmem:[%s151 + $0x228] sm:$0xff]
        %v248 = vld [vmem:[%s151 + $0x230] sm:$0xff]
        %v249 = vld [vmem:[%s151 + $0x238] sm:$0xff]
        %v250 = vld [vmem:[%s151 + $0x240] sm:$0xff]
        %v251 = vld [vmem:[%s151 + $0x248] sm:$0xff]
        %v252 = vld [vmem:[%s151 + $0x250] sm:$0xff]
        %v253 = vld [vmem:[%s151 + $0x258] sm:$0xff]
        %v254 = vld [vmem:[%s151 + $0x260] sm:$0xff]
        %v255 = vld [vmem:[%s151 + $0x268] sm:$0xff]
        %v256 = vld [vmem:[%s151 + $0x270] sm:$0xff]
        %v257 = vld [vmem:[%s151 + $0x278] sm:$0xff]
        %v258 = vld [vmem:[%s151 + $0x280] sm:$0xff]
        %v259 = vld [vmem:[%s151 + $0x288] sm:$0xff]
        %v260 = vld [vmem:[%s151 + $0x290] sm:$0xff]
        %v261 = vld [vmem:[%s151 + $0x298] sm:$0xff]
        %v262 = vld [vmem:[%s151 + $0x2a0] sm:$0xff]
        %v263 = vld [vmem:[%s151 + $0x2a8] sm:$0xff]
        %v264 = vld [vmem:[%s151 + $0x2b0] sm:$0xff]
        %v265 = vld [vmem:[%s151 + $0x2b8] sm:$0xff]
        %v266 = vld [vmem:[%s151 + $0x2c0] sm:$0xff]
        %v267 = vld [vmem:[%s151 + $0x2c8] sm:$0xff]
        %v268 = vld [vmem:[%s151 + $0x2d0] sm:$0xff]
        %v269 = vld [vmem:[%s151 + $0x2d8] sm:$0xff]
        %v270 = vld [vmem:[%s151 + $0x2e0] sm:$0xff]
        %v271 = vld [vmem:[%s151 + $0x2e8] sm:$0xff]
        %v272 = vld [vmem:[%s151 + $0x2f0] sm:$0xff]
        %v273 = vld [vmem:[%s151 + $0x2f8] sm:$0xff]
        %v274 = vld [vmem:[%s151 + $0x300] sm:$0xff]
        %v275 = vld [vmem:[%s151 + $0x308] sm:$0xff]
        %v276 = vld [vmem:[%s151 + $0x310] sm:$0xff]
        %v277 = vld [vmem:[%s151 + $0x318] sm:$0xff]
        %v278 = vld [vmem:[%s151 + $0x320] sm:$0xff]
        %v279 = vld [vmem:[%s151 + $0x328] sm:$0xff]
        %v280 = vld [vmem:[%s151 + $0x330] sm:$0xff]
        %v281 = vld [vmem:[%s151 + $0x338] sm:$0xff]
        %v282 = vld [vmem:[%s151 + $0x340] sm:$0xff]
        %v283 = vld [vmem:[%s151 + $0x348] sm:$0xff]
        %v284 = vld [vmem:[%s151 + $0x350] sm:$0xff]
        %v285 = vld [vmem:[%s151 + $0x358] sm:$0xff]
        %v286 = vld [vmem:[%s151 + $0x360] sm:$0xff]
        %v287 = vld [vmem:[%s151 + $0x368] sm:$0xff]
        %v288 = vld [vmem:[%s151 + $0x370] sm:$0xff]
        %v289 = vld [vmem:[%s151 + $0x378] sm:$0xff]
        %v290 = vld [vmem:[%s151 + $0x380] sm:$0xff]
        %v291 = vld [vmem:[%s151 + $0x388] sm:$0xff]
        %v292 = vld [vmem:[%s151 + $0x390] sm:$0xff]
        %v293 = vld [vmem:[%s151 + $0x398] sm:$0xff]
        %v294 = vld [vmem:[%s151 + $0x3a0] sm:$0xff]
        %v295 = vld [vmem:[%s151 + $0x3a8] sm:$0xff]
        %v296 = vld [vmem:[%s151 + $0x3b0] sm:$0xff]
        %v297 = vld [vmem:[%s151 + $0x3b8] sm:$0xff]
        %v298 = vld [vmem:[%s151 + $0x3c0] sm:$0xff]
        %v299 = vld [vmem:[%s151 + $0x3c8] sm:$0xff]
        %v300 = vld [vmem:[%s151 + $0x3d0] sm:$0xff]
        %v301 = vld [vmem:[%s151 + $0x3d8] sm:$0xff]
        %v302 = vld [vmem:[%s151 + $0x3e0] sm:$0xff]
        %v303 = vld [vmem:[%s151 + $0x3e8] sm:$0xff]
        %v304 = vld [vmem:[%s151 + $0x3f0] sm:$0xff]
        %v305 = vld [vmem:[%s151 + $0x3f8] sm:$0xff]
        %v306 = vld [vmem:[%s151 + $0x400] sm:$0xff]
        %v307 = vld [vmem:[%s151 + $0x408] sm:$0xff]
        %v308 = vld [vmem:[%s151 + $0x410] sm:$0xff]
        %v309 = vld [vmem:[%s151 + $0x418] sm:$0xff]
        %v310 = vld [vmem:[%s151 + $0x420] sm:$0xff]
        %v311 = vld [vmem:[%s151 + $0x428] sm:$0xff]
        %v312 = vld [vmem:[%s151 + $0x430] sm:$0xff]
        %v313 = vld [vmem:[%s151 + $0x438] sm:$0xff]
        %v314 = vld [vmem:[%s151 + $0x440] sm:$0xff]
        %v315 = vld [vmem:[%s151 + $0x448] sm:$0xff]
        %v316 = vld [vmem:[%s151 + $0x450] sm:$0xff]
        %v317 = vld [vmem:[%s151 + $0x458] sm:$0xff]
        %v318 = vld [vmem:[%s151 + $0x460] sm:$0xff]
        %v319 = vld [vmem:[%s151 + $0x468] sm:$0xff]
        %v320 = vld [vmem:[%s151 + $0x470] sm:$0xff]
        %v321 = vld [vmem:[%s151 + $0x478] sm:$0xff]
        %v322 = vld [vmem:[%s151 + $0x480] sm:$0xff]
        %v323 = vld [vmem:[%s151 + $0x488] sm:$0xff]
        %v324 = vld [vmem:[%s151 + $0x490] sm:$0xff]
        %v325 = vld [vmem:[%s151 + $0x498] sm:$0xff]
        %v326 = vld [vmem:[%s151 + $0x4a0] sm:$0xff]
        %v327 = vld [vmem:[%s151 + $0x4a8] sm:$0xff]
        %v328 = vld [vmem:[%s151 + $0x4b0] sm:$0xff]
        %v329 = vld [vmem:[%s151 + $0x4b8] sm:$0xff]
        %v330 = vld [vmem:[%s151 + $0x4c0] sm:$0xff]
        %v331 = vld [vmem:[%s151 + $0x4c8] sm:$0xff]
        %v332 = vld [vmem:[%s151 + $0x4d0] sm:$0xff]
        %v333 = vld [vmem:[%s151 + $0x4d8] sm:$0xff]
        %v334 = vld [vmem:[%s151 + $0x4e0] sm:$0xff]
        %v335 = vld [vmem:[%s151 + $0x4e8] sm:$0xff]
        %v336 = vld [vmem:[%s151 + $0x4f0] sm:$0xff]
        %v337 = vld [vmem:[%s151 + $0x4f8] sm:$0xff]
        %v338 = vmul.f32 %v178, %v178
        %v339 = vmul.f32 %v179, %v179
        %v340 = vmul.f32 %v180, %v180
        %v341 = vmul.f32 %v181, %v181
        %v342 = vmul.f32 %v182, %v182
        %v343 = vmul.f32 %v183, %v183
        %v344 = vmul.f32 %v184, %v184
        %v345 = vmul.f32 %v185, %v185
        %v346 = vmul.f32 %v186, %v186
        %v347 = vmul.f32 %v187, %v187
        %v348 = vmul.f32 %v188, %v188
        %v349 = vmul.f32 %v189, %v189
        %v350 = vmul.f32 %v190, %v190
        %v351 = vmul.f32 %v191, %v191
        %v352 = vmul.f32 %v192, %v192
        %v353 = vmul.f32 %v193, %v193
        %v354 = vmul.f32 %v194, %v194
        %v355 = vmul.f32 %v195, %v195
        %v356 = vmul.f32 %v196, %v196
        %v357 = vmul.f32 %v197, %v197
        %v358 = vmul.f32 %v198, %v198
        %v359 = vmul.f32 %v199, %v199
        %v360 = vmul.f32 %v200, %v200
        %v361 = vmul.f32 %v201, %v201
        %v362 = vmul.f32 %v202, %v202
        %v363 = vmul.f32 %v203, %v203
        %v364 = vmul.f32 %v204, %v204
        %v365 = vmul.f32 %v205, %v205
        %v366 = vmul.f32 %v206, %v206
        %v367 = vmul.f32 %v207, %v207
        %v368 = vmul.f32 %v208, %v208
        %v369 = vmul.f32 %v209, %v209
        %v370 = vmul.f32 %v210, %v210
        %v371 = vmul.f32 %v211, %v211
        %v372 = vmul.f32 %v212, %v212
        %v373 = vmul.f32 %v213, %v213
        %v374 = vmul.f32 %v214, %v214
        %v375 = vmul.f32 %v215, %v215
        %v376 = vmul.f32 %v216, %v216
        %v377 = vmul.f32 %v217, %v217
        %v378 = vmul.f32 %v218, %v218
        %v379 = vmul.f32 %v219, %v219
        %v380 = vmul.f32 %v220, %v220
        %v381 = vmul.f32 %v221, %v221
        %v382 = vmul.f32 %v222, %v222
        %v383 = vmul.f32 %v223, %v223
        %v384 = vmul.f32 %v224, %v224
        %v385 = vmul.f32 %v225, %v225
        %v386 = vmul.f32 %v226, %v226
        %v387 = vmul.f32 %v227, %v227
        %v388 = vmul.f32 %v228, %v228
        %v389 = vmul.f32 %v229, %v229
        %v390 = vmul.f32 %v230, %v230
        %v391 = vmul.f32 %v231, %v231
        %v392 = vmul.f32 %v232, %v232
        %v393 = vmul.f32 %v233, %v233
        %v394 = vmul.f32 %v234, %v234
        %v395 = vmul.f32 %v235, %v235
        %v396 = vmul.f32 %v236, %v236
        %v397 = vmul.f32 %v237, %v237
        %v398 = vmul.f32 %v238, %v238
        %v399 = vmul.f32 %v239, %v239
        %v400 = vmul.f32 %v240, %v240
        %v401 = vmul.f32 %v241, %v241
        %v402 = vmul.f32 %v242, %v242
        %v403 = vmul.f32 %v243, %v243
        %v404 = vmul.f32 %v244, %v244
        %v405 = vmul.f32 %v245, %v245
        %v406 = vmul.f32 %v246, %v246
        %v407 = vmul.f32 %v247, %v247
        %v408 = vmul.f32 %v248, %v248
        %v409 = vmul.f32 %v249, %v249
        %v410 = vmul.f32 %v250, %v250
        %v411 = vmul.f32 %v251, %v251
        %v412 = vmul.f32 %v252, %v252
        %v413 = vmul.f32 %v253, %v253
        %v414 = vmul.f32 %v254, %v254
        %v415 = vmul.f32 %v255, %v255
        %v416 = vmul.f32 %v256, %v256
        %v417 = vmul.f32 %v257, %v257
        %v418 = vmul.f32 %v258, %v258
        %v419 = vmul.f32 %v259, %v259
        %v420 = vmul.f32 %v260, %v260
        %v421 = vmul.f32 %v261, %v261
        %v422 = vmul.f32 %v262, %v262
        %v423 = vmul.f32 %v263, %v263
        %v424 = vmul.f32 %v264, %v264
        %v425 = vmul.f32 %v265, %v265
        %v426 = vmul.f32 %v266, %v266
        %v427 = vmul.f32 %v267, %v267
        %v428 = vmul.f32 %v268, %v268
        %v429 = vmul.f32 %v269, %v269
        %v430 = vmul.f32 %v270, %v270
        %v431 = vmul.f32 %v271, %v271
        %v432 = vmul.f32 %v272, %v272
        %v433 = vmul.f32 %v273, %v273
        %v434 = vmul.f32 %v274, %v274
        %v435 = vmul.f32 %v275, %v275
        %v436 = vmul.f32 %v276, %v276
        %v437 = vmul.f32 %v277, %v277
        %v438 = vmul.f32 %v278, %v278
        %v439 = vmul.f32 %v279, %v279
        %v440 = vmul.f32 %v280, %v280
        %v441 = vmul.f32 %v281, %v281
        %v442 = vmul.f32 %v282, %v282
        %v443 = vmul.f32 %v283, %v283
        %v444 = vmul.f32 %v284, %v284
        %v445 = vmul.f32 %v285, %v285
        %v446 = vmul.f32 %v286, %v286
        %v447 = vmul.f32 %v287, %v287
        %v448 = vmul.f32 %v288, %v288
        %v449 = vmul.f32 %v289, %v289
        %v450 = vmul.f32 %v290, %v290
        %v451 = vmul.f32 %v291, %v291
        %v452 = vmul.f32 %v292, %v292
        %v453 = vmul.f32 %v293, %v293
        %v454 = vmul.f32 %v294, %v294
        %v455 = vmul.f32 %v295, %v295
        %v456 = vmul.f32 %v296, %v296
        %v457 = vmul.f32 %v297, %v297
        %v458 = vmul.f32 %v298, %v298
        %v459 = vmul.f32 %v299, %v299
        %v460 = vmul.f32 %v300, %v300
        %v461 = vmul.f32 %v301, %v301
        %v462 = vmul.f32 %v302, %v302
        %v463 = vmul.f32 %v303, %v303
        %v464 = vmul.f32 %v304, %v304
        %v465 = vmul.f32 %v305, %v305
        %v466 = vmul.f32 %v306, %v306
        %v467 = vmul.f32 %v307, %v307
        %v468 = vmul.f32 %v308, %v308
        %v469 = vmul.f32 %v309, %v309
        %v470 = vmul.f32 %v310, %v310
        %v471 = vmul.f32 %v311, %v311
        %v472 = vmul.f32 %v312, %v312
        %v473 = vmul.f32 %v313, %v313
        %v474 = vmul.f32 %v314, %v314
        %v475 = vmul.f32 %v315, %v315
        %v476 = vmul.f32 %v316, %v316
        %v477 = vmul.f32 %v317, %v317
        %v478 = vmul.f32 %v318, %v318
        %v479 = vmul.f32 %v319, %v319
        %v480 = vmul.f32 %v320, %v320
        %v481 = vmul.f32 %v321, %v321
        %v482 = vmul.f32 %v322, %v322
        %v483 = vmul.f32 %v323, %v323
        %v484 = vmul.f32 %v324, %v324
        %v485 = vmul.f32 %v325, %v325
        %v486 = vmul.f32 %v326, %v326
        %v487 = vmul.f32 %v327, %v327
        %v488 = vmul.f32 %v328, %v328
        %v489 = vmul.f32 %v329, %v329
        %v490 = vmul.f32 %v330, %v330
        %v491 = vmul.f32 %v331, %v331
        %v492 = vmul.f32 %v332, %v332
        %v493 = vmul.f32 %v333, %v333
        %v494 = vmul.f32 %v334, %v334
        %v495 = vmul.f32 %v335, %v335
        %v496 = vmul.f32 %v336, %v336
        %v497 = vmul.f32 %v337, %v337
        %v498 = vadd.f32 %v338, %v339
        %v499 = vadd.f32 %v498, %v340
        %v500 = vadd.f32 %v499, %v341
        %501 = vadd.xlane.f32.xlu0 %v500
        %v502 = vpop.xlane.xlu0 %501
        %v503 = vadd.f32 %v342, %v343
        %v504 = vadd.f32 %v503, %v344
        %v505 = vadd.f32 %v504, %v345
        %506 = vadd.xlane.f32.xlu0 %v505
        %v507 = vpop.xlane.xlu0 %506
        %v508 = vadd.f32 %v346, %v347
        %v509 = vadd.f32 %v508, %v348
        %v510 = vadd.f32 %v509, %v349
        %511 = vadd.xlane.f32.xlu0 %v510
        %v512 = vpop.xlane.xlu0 %511
        %v513 = vadd.f32 %v350, %v351
        %v514 = vadd.f32 %v513, %v352
        %v515 = vadd.f32 %v514, %v353
        %516 = vadd.xlane.f32.xlu0 %v515
        %v517 = vpop.xlane.xlu0 %516
        %v518 = vadd.f32 %v354, %v355
        %v519 = vadd.f32 %v518, %v356
        %v520 = vadd.f32 %v519, %v357
        %521 = vadd.xlane.f32.xlu0 %v520
        %v522 = vpop.xlane.xlu0 %521
        %v523 = vadd.f32 %v358, %v359
        %v524 = vadd.f32 %v523, %v360
        %v525 = vadd.f32 %v524, %v361
        %526 = vadd.xlane.f32.xlu0 %v525
        %v527 = vpop.xlane.xlu0 %526
        %v528 = vadd.f32 %v362, %v363
        %v529 = vadd.f32 %v528, %v364
        %v530 = vadd.f32 %v529, %v365
        %531 = vadd.xlane.f32.xlu0 %v530
        %v532 = vpop.xlane.xlu0 %531
        %v533 = vadd.f32 %v366, %v367
        %v534 = vadd.f32 %v533, %v368
        %v535 = vadd.f32 %v534, %v369
        %536 = vadd.xlane.f32.xlu0 %v535
        %v537 = vpop.xlane.xlu0 %536
        %v538 = vadd.f32 %v370, %v371
        %v539 = vadd.f32 %v538, %v372
        %v540 = vadd.f32 %v539, %v373
        %541 = vadd.xlane.f32.xlu0 %v540
        %v542 = vpop.xlane.xlu0 %541
        %v543 = vadd.f32 %v374, %v375
        %v544 = vadd.f32 %v543, %v376
        %v545 = vadd.f32 %v544, %v377
        %546 = vadd.xlane.f32.xlu0 %v545
        %v547 = vpop.xlane.xlu0 %546
        %v548 = vadd.f32 %v378, %v379
        %v549 = vadd.f32 %v548, %v380
        %v550 = vadd.f32 %v549, %v381
        %551 = vadd.xlane.f32.xlu0 %v550
        %v552 = vpop.xlane.xlu0 %551
        %v553 = vadd.f32 %v382, %v383
        %v554 = vadd.f32 %v553, %v384
        %v555 = vadd.f32 %v554, %v385
        %556 = vadd.xlane.f32.xlu0 %v555
        %v557 = vpop.xlane.xlu0 %556
        %v558 = vadd.f32 %v386, %v387
        %v559 = vadd.f32 %v558, %v388
        %v560 = vadd.f32 %v559, %v389
        %561 = vadd.xlane.f32.xlu0 %v560
        %v562 = vpop.xlane.xlu0 %561
        %v563 = vadd.f32 %v390, %v391
        %v564 = vadd.f32 %v563, %v392
        %v565 = vadd.f32 %v564, %v393
        %566 = vadd.xlane.f32.xlu0 %v565
        %v567 = vpop.xlane.xlu0 %566
        %v568 = vadd.f32 %v394, %v395
        %v569 = vadd.f32 %v568, %v396
        %v570 = vadd.f32 %v569, %v397
        %571 = vadd.xlane.f32.xlu0 %v570
        %v572 = vpop.xlane.xlu0 %571
        %v573 = vadd.f32 %v398, %v399
        %v574 = vadd.f32 %v573, %v400
        %v575 = vadd.f32 %v574, %v401
        %576 = vadd.xlane.f32.xlu0 %v575
        %v577 = vpop.xlane.xlu0 %576
        %v578 = vadd.f32 %v402, %v403
        %v579 = vadd.f32 %v578, %v404
        %v580 = vadd.f32 %v579, %v405
        %581 = vadd.xlane.f32.xlu0 %v580
        %v582 = vpop.xlane.xlu0 %581
        %v583 = vadd.f32 %v406, %v407
        %v584 = vadd.f32 %v583, %v408
        %v585 = vadd.f32 %v584, %v409
        %586 = vadd.xlane.f32.xlu0 %v585
        %v587 = vpop.xlane.xlu0 %586
        %v588 = vadd.f32 %v410, %v411
        %v589 = vadd.f32 %v588, %v412
        %v590 = vadd.f32 %v589, %v413
        %591 = vadd.xlane.f32.xlu0 %v590
        %v592 = vpop.xlane.xlu0 %591
        %v593 = vadd.f32 %v414, %v415
        %v594 = vadd.f32 %v593, %v416
        %v595 = vadd.f32 %v594, %v417
        %596 = vadd.xlane.f32.xlu0 %v595
        %v597 = vpop.xlane.xlu0 %596
        %v598 = vadd.f32 %v418, %v419
        %v599 = vadd.f32 %v598, %v420
        %v600 = vadd.f32 %v599, %v421
        %601 = vadd.xlane.f32.xlu0 %v600
        %v602 = vpop.xlane.xlu0 %601
        %v603 = vadd.f32 %v422, %v423
        %v604 = vadd.f32 %v603, %v424
        %v605 = vadd.f32 %v604, %v425
        %606 = vadd.xlane.f32.xlu0 %v605
        %v607 = vpop.xlane.xlu0 %606
        %v608 = vadd.f32 %v426, %v427
        %v609 = vadd.f32 %v608, %v428
        %v610 = vadd.f32 %v609, %v429
        %611 = vadd.xlane.f32.xlu0 %v610
        %v612 = vpop.xlane.xlu0 %611
        %v613 = vadd.f32 %v430, %v431
        %v614 = vadd.f32 %v613, %v432
        %v615 = vadd.f32 %v614, %v433
        %616 = vadd.xlane.f32.xlu0 %v615
        %v617 = vpop.xlane.xlu0 %616
        %v618 = vadd.f32 %v434, %v435
        %v619 = vadd.f32 %v618, %v436
        %v620 = vadd.f32 %v619, %v437
        %621 = vadd.xlane.f32.xlu0 %v620
        %v622 = vpop.xlane.xlu0 %621
        %v623 = vadd.f32 %v438, %v439
        %v624 = vadd.f32 %v623, %v440
        %v625 = vadd.f32 %v624, %v441
        %626 = vadd.xlane.f32.xlu0 %v625
        %v627 = vpop.xlane.xlu0 %626
        %v628 = vadd.f32 %v442, %v443
        %v629 = vadd.f32 %v628, %v444
        %v630 = vadd.f32 %v629, %v445
        %631 = vadd.xlane.f32.xlu0 %v630
        %v632 = vpop.xlane.xlu0 %631
        %v633 = vadd.f32 %v446, %v447
        %v634 = vadd.f32 %v633, %v448
        %v635 = vadd.f32 %v634, %v449
        %636 = vadd.xlane.f32.xlu0 %v635
        %v637 = vpop.xlane.xlu0 %636
        %v638 = vadd.f32 %v450, %v451
        %v639 = vadd.f32 %v638, %v452
        %v640 = vadd.f32 %v639, %v453
        %641 = vadd.xlane.f32.xlu0 %v640
        %v642 = vpop.xlane.xlu0 %641
        %v643 = vadd.f32 %v454, %v455
        %v644 = vadd.f32 %v643, %v456
        %v645 = vadd.f32 %v644, %v457
        %646 = vadd.xlane.f32.xlu0 %v645
        %v647 = vpop.xlane.xlu0 %646
        %v648 = vadd.f32 %v458, %v459
        %v649 = vadd.f32 %v648, %v460
        %v650 = vadd.f32 %v649, %v461
        %651 = vadd.xlane.f32.xlu0 %v650
        %v652 = vpop.xlane.xlu0 %651
        %v653 = vadd.f32 %v462, %v463
        %v654 = vadd.f32 %v653, %v464
        %v655 = vadd.f32 %v654, %v465
        %656 = vadd.xlane.f32.xlu0 %v655
        %v657 = vpop.xlane.xlu0 %656
        %v658 = vadd.f32 %v466, %v467
        %v659 = vadd.f32 %v658, %v468
        %v660 = vadd.f32 %v659, %v469
        %661 = vadd.xlane.f32.xlu0 %v660
        %v662 = vpop.xlane.xlu0 %661
        %v663 = vadd.f32 %v470, %v471
        %v664 = vadd.f32 %v663, %v472
        %v665 = vadd.f32 %v664, %v473
        %666 = vadd.xlane.f32.xlu0 %v665
        %v667 = vpop.xlane.xlu0 %666
        %v668 = vadd.f32 %v474, %v475
        %v669 = vadd.f32 %v668, %v476
        %v670 = vadd.f32 %v669, %v477
        %671 = vadd.xlane.f32.xlu0 %v670
        %v672 = vpop.xlane.xlu0 %671
        %v673 = vadd.f32 %v478, %v479
        %v674 = vadd.f32 %v673, %v480
        %v675 = vadd.f32 %v674, %v481
        %676 = vadd.xlane.f32.xlu0 %v675
        %v677 = vpop.xlane.xlu0 %676
        %v678 = vadd.f32 %v482, %v483
        %v679 = vadd.f32 %v678, %v484
        %v680 = vadd.f32 %v679, %v485
        %681 = vadd.xlane.f32.xlu0 %v680
        %v682 = vpop.xlane.xlu0 %681
        %v683 = vadd.f32 %v486, %v487
        %v684 = vadd.f32 %v683, %v488
        %v685 = vadd.f32 %v684, %v489
        %686 = vadd.xlane.f32.xlu0 %v685
        %v687 = vpop.xlane.xlu0 %686
        %v688 = vadd.f32 %v490, %v491
        %v689 = vadd.f32 %v688, %v492
        %v690 = vadd.f32 %v689, %v493
        %691 = vadd.xlane.f32.xlu0 %v690
        %v692 = vpop.xlane.xlu0 %691
        %v693 = vadd.f32 %v494, %v495
        %v694 = vadd.f32 %v693, %v496
        %v695 = vadd.f32 %v694, %v497
        %696 = vadd.xlane.f32.xlu0 %v695
        %v697 = vpop.xlane.xlu0 %696
        %v698 = vrcp.pop 512.0
        %v699 = vmul.f32 %v502, %v698
        %v700 = vmul.f32 %v507, %v698
        %v701 = vmul.f32 %v512, %v698
        %v702 = vmul.f32 %v517, %v698
        %v703 = vmul.f32 %v522, %v698
        %v704 = vmul.f32 %v527, %v698
        %v705 = vmul.f32 %v532, %v698
        %v706 = vmul.f32 %v537, %v698
        %v707 = vmul.f32 %v542, %v698
        %v708 = vmul.f32 %v547, %v698
        %v709 = vmul.f32 %v552, %v698
        %v710 = vmul.f32 %v557, %v698
        %v711 = vmul.f32 %v562, %v698
        %v712 = vmul.f32 %v567, %v698
        %v713 = vmul.f32 %v572, %v698
        %v714 = vmul.f32 %v577, %v698
        %v715 = vmul.f32 %v582, %v698
        %v716 = vmul.f32 %v587, %v698
        %v717 = vmul.f32 %v592, %v698
        %v718 = vmul.f32 %v597, %v698
        %v719 = vmul.f32 %v602, %v698
        %v720 = vmul.f32 %v607, %v698
        %v721 = vmul.f32 %v612, %v698
        %v722 = vmul.f32 %v617, %v698
        %v723 = vmul.f32 %v622, %v698
        %v724 = vmul.f32 %v627, %v698
        %v725 = vmul.f32 %v632, %v698
        %v726 = vmul.f32 %v637, %v698
        %v727 = vmul.f32 %v642, %v698
        %v728 = vmul.f32 %v647, %v698
        %v729 = vmul.f32 %v652, %v698
        %v730 = vmul.f32 %v657, %v698
        %v731 = vmul.f32 %v662, %v698
        %v732 = vmul.f32 %v667, %v698
        %v733 = vmul.f32 %v672, %v698
        %v734 = vmul.f32 %v677, %v698
        %v735 = vmul.f32 %v682, %v698
        %v736 = vmul.f32 %v687, %v698
        %v737 = vmul.f32 %v692, %v698
        %v738 = vmul.f32 %v697, %v698
        %v739 = vadd.f32 %v699, 1e-06
        %v740 = vadd.f32 %v700, 1e-06
        %v741 = vadd.f32 %v701, 1e-06
        %v742 = vadd.f32 %v702, 1e-06
        %v743 = vadd.f32 %v703, 1e-06
        %v744 = vadd.f32 %v704, 1e-06
        %v745 = vadd.f32 %v705, 1e-06
        %v746 = vadd.f32 %v706, 1e-06
        %v747 = vadd.f32 %v707, 1e-06
        %v748 = vadd.f32 %v708, 1e-06
        %v749 = vadd.f32 %v709, 1e-06
        %v750 = vadd.f32 %v710, 1e-06
        %v751 = vadd.f32 %v711, 1e-06
        %v752 = vadd.f32 %v712, 1e-06
        %v753 = vadd.f32 %v713, 1e-06
        %v754 = vadd.f32 %v714, 1e-06
        %v755 = vadd.f32 %v715, 1e-06
        %v756 = vadd.f32 %v716, 1e-06
        %v757 = vadd.f32 %v717, 1e-06
        %v758 = vadd.f32 %v718, 1e-06
        %v759 = vadd.f32 %v719, 1e-06
        %v760 = vadd.f32 %v720, 1e-06
        %v761 = vadd.f32 %v721, 1e-06
        %v762 = vadd.f32 %v722, 1e-06
        %v763 = vadd.f32 %v723, 1e-06
        %v764 = vadd.f32 %v724, 1e-06
        %v765 = vadd.f32 %v725, 1e-06
        %v766 = vadd.f32 %v726, 1e-06
        %v767 = vadd.f32 %v727, 1e-06
        %v768 = vadd.f32 %v728, 1e-06
        %v769 = vadd.f32 %v729, 1e-06
        %v770 = vadd.f32 %v730, 1e-06
        %v771 = vadd.f32 %v731, 1e-06
        %v772 = vadd.f32 %v732, 1e-06
        %v773 = vadd.f32 %v733, 1e-06
        %v774 = vadd.f32 %v734, 1e-06
        %v775 = vadd.f32 %v735, 1e-06
        %v776 = vadd.f32 %v736, 1e-06
        %v777 = vadd.f32 %v737, 1e-06
        %v778 = vadd.f32 %v738, 1e-06
        %v779 = vrsqrt.pop %v739
        %v780 = vrsqrt.pop %v740
        %v781 = vrsqrt.pop %v741
        %v782 = vrsqrt.pop %v742
        %v783 = vrsqrt.pop %v743
        %v784 = vrsqrt.pop %v744
        %v785 = vrsqrt.pop %v745
        %v786 = vrsqrt.pop %v746
        %v787 = vrsqrt.pop %v747
        %v788 = vrsqrt.pop %v748
        %v789 = vrsqrt.pop %v749
        %v790 = vrsqrt.pop %v750
        %v791 = vrsqrt.pop %v751
        %v792 = vrsqrt.pop %v752
        %v793 = vrsqrt.pop %v753
        %v794 = vrsqrt.pop %v754
        %v795 = vrsqrt.pop %v755
        %v796 = vrsqrt.pop %v756
        %v797 = vrsqrt.pop %v757
        %v798 = vrsqrt.pop %v758
        %v799 = vrsqrt.pop %v759
        %v800 = vrsqrt.pop %v760
        %v801 = vrsqrt.pop %v761
        %v802 = vrsqrt.pop %v762
        %v803 = vrsqrt.pop %v763
        %v804 = vrsqrt.pop %v764
        %v805 = vrsqrt.pop %v765
        %v806 = vrsqrt.pop %v766
        %v807 = vrsqrt.pop %v767
        %v808 = vrsqrt.pop %v768
        %v809 = vrsqrt.pop %v769
        %v810 = vrsqrt.pop %v770
        %v811 = vrsqrt.pop %v771
        %v812 = vrsqrt.pop %v772
        %v813 = vrsqrt.pop %v773
        %v814 = vrsqrt.pop %v774
        %v815 = vrsqrt.pop %v775
        %v816 = vrsqrt.pop %v776
        %v817 = vrsqrt.pop %v777
        %v818 = vrsqrt.pop %v778
        %v819 = vmul.f32 %v178, %v779
        %v820 = vmul.f32 %v179, %v779
        %v821 = vmul.f32 %v180, %v779
        %v822 = vmul.f32 %v181, %v779
        %v823 = vmul.f32 %v182, %v780
        %v824 = vmul.f32 %v183, %v780
        %v825 = vmul.f32 %v184, %v780
        %v826 = vmul.f32 %v185, %v780
        %v827 = vmul.f32 %v186, %v781
        %v828 = vmul.f32 %v187, %v781
        %v829 = vmul.f32 %v188, %v781
        %v830 = vmul.f32 %v189, %v781
        %v831 = vmul.f32 %v190, %v782
        %v832 = vmul.f32 %v191, %v782
        %v833 = vmul.f32 %v192, %v782
        %v834 = vmul.f32 %v193, %v782
        %v835 = vmul.f32 %v194, %v783
        %v836 = vmul.f32 %v195, %v783
        %v837 = vmul.f32 %v196, %v783
        %v838 = vmul.f32 %v197, %v783
        %v839 = vmul.f32 %v198, %v784
        %v840 = vmul.f32 %v199, %v784
        %v841 = vmul.f32 %v200, %v784
        %v842 = vmul.f32 %v201, %v784
        %v843 = vmul.f32 %v202, %v785
        %v844 = vmul.f32 %v203, %v785
        %v845 = vmul.f32 %v204, %v785
        %v846 = vmul.f32 %v205, %v785
        %v847 = vmul.f32 %v206, %v786
        %v848 = vmul.f32 %v207, %v786
        %v849 = vmul.f32 %v208, %v786
        %v850 = vmul.f32 %v209, %v786
        %v851 = vmul.f32 %v210, %v787
        %v852 = vmul.f32 %v211, %v787
        %v853 = vmul.f32 %v212, %v787
        %v854 = vmul.f32 %v213, %v787
        %v855 = vmul.f32 %v214, %v788
        %v856 = vmul.f32 %v215, %v788
        %v857 = vmul.f32 %v216, %v788
        %v858 = vmul.f32 %v217, %v788
        %v859 = vmul.f32 %v218, %v789
        %v860 = vmul.f32 %v219, %v789
        %v861 = vmul.f32 %v220, %v789
        %v862 = vmul.f32 %v221, %v789
        %v863 = vmul.f32 %v222, %v790
        %v864 = vmul.f32 %v223, %v790
        %v865 = vmul.f32 %v224, %v790
        %v866 = vmul.f32 %v225, %v790
        %v867 = vmul.f32 %v226, %v791
        %v868 = vmul.f32 %v227, %v791
        %v869 = vmul.f32 %v228, %v791
        %v870 = vmul.f32 %v229, %v791
        %v871 = vmul.f32 %v230, %v792
        %v872 = vmul.f32 %v231, %v792
        %v873 = vmul.f32 %v232, %v792
        %v874 = vmul.f32 %v233, %v792
        %v875 = vmul.f32 %v234, %v793
        %v876 = vmul.f32 %v235, %v793
        %v877 = vmul.f32 %v236, %v793
        %v878 = vmul.f32 %v237, %v793
        %v879 = vmul.f32 %v238, %v794
        %v880 = vmul.f32 %v239, %v794
        %v881 = vmul.f32 %v240, %v794
        %v882 = vmul.f32 %v241, %v794
        %v883 = vmul.f32 %v242, %v795
        %v884 = vmul.f32 %v243, %v795
        %v885 = vmul.f32 %v244, %v795
        %v886 = vmul.f32 %v245, %v795
        %v887 = vmul.f32 %v246, %v796
        %v888 = vmul.f32 %v247, %v796
        %v889 = vmul.f32 %v248, %v796
        %v890 = vmul.f32 %v249, %v796
        %v891 = vmul.f32 %v250, %v797
        %v892 = vmul.f32 %v251, %v797
        %v893 = vmul.f32 %v252, %v797
        %v894 = vmul.f32 %v253, %v797
        %v895 = vmul.f32 %v254, %v798
        %v896 = vmul.f32 %v255, %v798
        %v897 = vmul.f32 %v256, %v798
        %v898 = vmul.f32 %v257, %v798
        %v899 = vmul.f32 %v258, %v799
        %v900 = vmul.f32 %v259, %v799
        %v901 = vmul.f32 %v260, %v799
        %v902 = vmul.f32 %v261, %v799
        %v903 = vmul.f32 %v262, %v800
        %v904 = vmul.f32 %v263, %v800
        %v905 = vmul.f32 %v264, %v800
        %v906 = vmul.f32 %v265, %v800
        %v907 = vmul.f32 %v266, %v801
        %v908 = vmul.f32 %v267, %v801
        %v909 = vmul.f32 %v268, %v801
        %v910 = vmul.f32 %v269, %v801
        %v911 = vmul.f32 %v270, %v802
        %v912 = vmul.f32 %v271, %v802
        %v913 = vmul.f32 %v272, %v802
        %v914 = vmul.f32 %v273, %v802
        %v915 = vmul.f32 %v274, %v803
        %v916 = vmul.f32 %v275, %v803
        %v917 = vmul.f32 %v276, %v803
        %v918 = vmul.f32 %v277, %v803
        %v919 = vmul.f32 %v278, %v804
        %v920 = vmul.f32 %v279, %v804
        %v921 = vmul.f32 %v280, %v804
        %v922 = vmul.f32 %v281, %v804
        %v923 = vmul.f32 %v282, %v805
        %v924 = vmul.f32 %v283, %v805
        %v925 = vmul.f32 %v284, %v805
        %v926 = vmul.f32 %v285, %v805
        %v927 = vmul.f32 %v286, %v806
        %v928 = vmul.f32 %v287, %v806
        %v929 = vmul.f32 %v288, %v806
        %v930 = vmul.f32 %v289, %v806
        %v931 = vmul.f32 %v290, %v807
        %v932 = vmul.f32 %v291, %v807
        %v933 = vmul.f32 %v292, %v807
        %v934 = vmul.f32 %v293, %v807
        %v935 = vmul.f32 %v294, %v808
        %v936 = vmul.f32 %v295, %v808
        %v937 = vmul.f32 %v296, %v808
        %v938 = vmul.f32 %v297, %v808
        %v939 = vmul.f32 %v298, %v809
        %v940 = vmul.f32 %v299, %v809
        %v941 = vmul.f32 %v300, %v809
        %v942 = vmul.f32 %v301, %v809
        %v943 = vmul.f32 %v302, %v810
        %v944 = vmul.f32 %v303, %v810
        %v945 = vmul.f32 %v304, %v810
        %v946 = vmul.f32 %v305, %v810
        %v947 = vmul.f32 %v306, %v811
        %v948 = vmul.f32 %v307, %v811
        %v949 = vmul.f32 %v308, %v811
        %v950 = vmul.f32 %v309, %v811
        %v951 = vmul.f32 %v310, %v812
        %v952 = vmul.f32 %v311, %v812
        %v953 = vmul.f32 %v312, %v812
        %v954 = vmul.f32 %v313, %v812
        %v955 = vmul.f32 %v314, %v813
        %v956 = vmul.f32 %v315, %v813
        %v957 = vmul.f32 %v316, %v813
        %v958 = vmul.f32 %v317, %v813
        %v959 = vmul.f32 %v318, %v814
        %v960 = vmul.f32 %v319, %v814
        %v961 = vmul.f32 %v320, %v814
        %v962 = vmul.f32 %v321, %v814
        %v963 = vmul.f32 %v322, %v815
        %v964 = vmul.f32 %v323, %v815
        %v965 = vmul.f32 %v324, %v815
        %v966 = vmul.f32 %v325, %v815
        %v967 = vmul.f32 %v326, %v816
        %v968 = vmul.f32 %v327, %v816
        %v969 = vmul.f32 %v328, %v816
        %v970 = vmul.f32 %v329, %v816
        %v971 = vmul.f32 %v330, %v817
        %v972 = vmul.f32 %v331, %v817
        %v973 = vmul.f32 %v332, %v817
        %v974 = vmul.f32 %v333, %v817
        %v975 = vmul.f32 %v334, %v818
        %v976 = vmul.f32 %v335, %v818
        %v977 = vmul.f32 %v336, %v818
        %v978 = vmul.f32 %v337, %v818
        %v979 = vld [vmem:[#allocation5] sm:$0xf]
        %v981 = vlaneseq
        %v982 = vshrl.u32 %v981, 7
        %v983 = vsub.s32 0, %v982
        %v984 = vrot.slane %v979, %v983
        %v985 = vlaneseq
        %v986 = vshrl.u32 %v985, 7
        %v987 = vsub.s32 1, %v986
        %v988 = vrot.slane %v979, %v987
        %v989 = vlaneseq
        %v990 = vshrl.u32 %v989, 7
        %v991 = vsub.s32 2, %v990
        %v992 = vrot.slane %v979, %v991
        %v993 = vlaneseq
        %v994 = vshrl.u32 %v993, 7
        %v995 = vsub.s32 3, %v994
        %v996 = vrot.slane %v979, %v995
        %v1001 = vmul.f32 %v819, %v984
        %v1002 = vmul.f32 %v820, %v988
        %v1003 = vmul.f32 %v821, %v992
        %v1004 = vmul.f32 %v822, %v996
        %v1005 = vmul.f32 %v823, %v984
        %v1006 = vmul.f32 %v824, %v988
        %v1007 = vmul.f32 %v825, %v992
        %v1008 = vmul.f32 %v826, %v996
        %v1009 = vmul.f32 %v827, %v984
        %v1010 = vmul.f32 %v828, %v988
        %v1011 = vmul.f32 %v829, %v992
        %v1012 = vmul.f32 %v830, %v996
        %v1013 = vmul.f32 %v831, %v984
        %v1014 = vmul.f32 %v832, %v988
        %v1015 = vmul.f32 %v833, %v992
        %v1016 = vmul.f32 %v834, %v996
        %v1017 = vmul.f32 %v835, %v984
        %v1018 = vmul.f32 %v836, %v988
        %v1019 = vmul.f32 %v837, %v992
        %v1020 = vmul.f32 %v838, %v996
        %v1021 = vmul.f32 %v839, %v984
        %v1022 = vmul.f32 %v840, %v988
        %v1023 = vmul.f32 %v841, %v992
        %v1024 = vmul.f32 %v842, %v996
        %v1025 = vmul.f32 %v843, %v984
        %v1026 = vmul.f32 %v844, %v988
        %v1027 = vmul.f32 %v845, %v992
        %v1028 = vmul.f32 %v846, %v996
        %v1029 = vmul.f32 %v847, %v984
        %v1030 = vmul.f32 %v848, %v988
        %v1031 = vmul.f32 %v849, %v992
        %v1032 = vmul.f32 %v850, %v996
        %v1033 = vmul.f32 %v851, %v984
        %v1034 = vmul.f32 %v852, %v988
        %v1035 = vmul.f32 %v853, %v992
        %v1036 = vmul.f32 %v854, %v996
        %v1037 = vmul.f32 %v855, %v984
        %v1038 = vmul.f32 %v856, %v988
        %v1039 = vmul.f32 %v857, %v992
        %v1040 = vmul.f32 %v858, %v996
        %v1041 = vmul.f32 %v859, %v984
        %v1042 = vmul.f32 %v860, %v988
        %v1043 = vmul.f32 %v861, %v992
        %v1044 = vmul.f32 %v862, %v996
        %v1045 = vmul.f32 %v863, %v984
        %v1046 = vmul.f32 %v864, %v988
        %v1047 = vmul.f32 %v865, %v992
        %v1048 = vmul.f32 %v866, %v996
        %v1049 = vmul.f32 %v867, %v984
        %v1050 = vmul.f32 %v868, %v988
        %v1051 = vmul.f32 %v869, %v992
        %v1052 = vmul.f32 %v870, %v996
        %v1053 = vmul.f32 %v871, %v984
        %v1054 = vmul.f32 %v872, %v988
        %v1055 = vmul.f32 %v873, %v992
        %v1056 = vmul.f32 %v874, %v996
        %v1057 = vmul.f32 %v875, %v984
        %v1058 = vmul.f32 %v876, %v988
        %v1059 = vmul.f32 %v877, %v992
        %v1060 = vmul.f32 %v878, %v996
        %v1061 = vmul.f32 %v879, %v984
        %v1062 = vmul.f32 %v880, %v988
        %v1063 = vmul.f32 %v881, %v992
        %v1064 = vmul.f32 %v882, %v996
        %v1065 = vmul.f32 %v883, %v984
        %v1066 = vmul.f32 %v884, %v988
        %v1067 = vmul.f32 %v885, %v992
        %v1068 = vmul.f32 %v886, %v996
        %v1069 = vmul.f32 %v887, %v984
        %v1070 = vmul.f32 %v888, %v988
        %v1071 = vmul.f32 %v889, %v992
        %v1072 = vmul.f32 %v890, %v996
        %v1073 = vmul.f32 %v891, %v984
        %v1074 = vmul.f32 %v892, %v988
        %v1075 = vmul.f32 %v893, %v992
        %v1076 = vmul.f32 %v894, %v996
        %v1077 = vmul.f32 %v895, %v984
        %v1078 = vmul.f32 %v896, %v988
        %v1079 = vmul.f32 %v897, %v992
        %v1080 = vmul.f32 %v898, %v996
        %v1081 = vmul.f32 %v899, %v984
        %v1082 = vmul.f32 %v900, %v988
        %v1083 = vmul.f32 %v901, %v992
        %v1084 = vmul.f32 %v902, %v996
        %v1085 = vmul.f32 %v903, %v984
        %v1086 = vmul.f32 %v904, %v988
        %v1087 = vmul.f32 %v905, %v992
        %v1088 = vmul.f32 %v906, %v996
        %v1089 = vmul.f32 %v907, %v984
        %v1090 = vmul.f32 %v908, %v988
        %v1091 = vmul.f32 %v909, %v992
        %v1092 = vmul.f32 %v910, %v996
        %v1093 = vmul.f32 %v911, %v984
        %v1094 = vmul.f32 %v912, %v988
        %v1095 = vmul.f32 %v913, %v992
        %v1096 = vmul.f32 %v914, %v996
        %v1097 = vmul.f32 %v915, %v984
        %v1098 = vmul.f32 %v916, %v988
        %v1099 = vmul.f32 %v917, %v992
        %v1100 = vmul.f32 %v918, %v996
        %v1101 = vmul.f32 %v919, %v984
        %v1102 = vmul.f32 %v920, %v988
        %v1103 = vmul.f32 %v921, %v992
        %v1104 = vmul.f32 %v922, %v996
        %v1105 = vmul.f32 %v923, %v984
        %v1106 = vmul.f32 %v924, %v988
        %v1107 = vmul.f32 %v925, %v992
        %v1108 = vmul.f32 %v926, %v996
        %v1109 = vmul.f32 %v927, %v984
        %v1110 = vmul.f32 %v928, %v988
        %v1111 = vmul.f32 %v929, %v992
        %v1112 = vmul.f32 %v930, %v996
        %v1113 = vmul.f32 %v931, %v984
        %v1114 = vmul.f32 %v932, %v988
        %v1115 = vmul.f32 %v933, %v992
        %v1116 = vmul.f32 %v934, %v996
        %v1117 = vmul.f32 %v935, %v984
        %v1118 = vmul.f32 %v936, %v988
        %v1119 = vmul.f32 %v937, %v992
        %v1120 = vmul.f32 %v938, %v996
        %v1121 = vmul.f32 %v939, %v984
        %v1122 = vmul.f32 %v940, %v988
        %v1123 = vmul.f32 %v941, %v992
        %v1124 = vmul.f32 %v942, %v996
        %v1125 = vmul.f32 %v943, %v984
        %v1126 = vmul.f32 %v944, %v988
        %v1127 = vmul.f32 %v945, %v992
        %v1128 = vmul.f32 %v946, %v996
        %v1129 = vmul.f32 %v947, %v984
        %v1130 = vmul.f32 %v948, %v988
        %v1131 = vmul.f32 %v949, %v992
        %v1132 = vmul.f32 %v950, %v996
        %v1133 = vmul.f32 %v951, %v984
        %v1134 = vmul.f32 %v952, %v988
        %v1135 = vmul.f32 %v953, %v992
        %v1136 = vmul.f32 %v954, %v996
        %v1137 = vmul.f32 %v955, %v984
        %v1138 = vmul.f32 %v956, %v988
        %v1139 = vmul.f32 %v957, %v992
        %v1140 = vmul.f32 %v958, %v996
        %v1141 = vmul.f32 %v959, %v984
        %v1142 = vmul.f32 %v960, %v988
        %v1143 = vmul.f32 %v961, %v992
        %v1144 = vmul.f32 %v962, %v996
        %v1145 = vmul.f32 %v963, %v984
        %v1146 = vmul.f32 %v964, %v988
        %v1147 = vmul.f32 %v965, %v992
        %v1148 = vmul.f32 %v966, %v996
        %v1149 = vmul.f32 %v967, %v984
        %v1150 = vmul.f32 %v968, %v988
        %v1151 = vmul.f32 %v969, %v992
        %v1152 = vmul.f32 %v970, %v996
        %v1153 = vmul.f32 %v971, %v984
        %v1154 = vmul.f32 %v972, %v988
        %v1155 = vmul.f32 %v973, %v992
        %v1156 = vmul.f32 %v974, %v996
        %v1157 = vmul.f32 %v975, %v984
        %v1158 = vmul.f32 %v976, %v988
        %v1159 = vmul.f32 %v977, %v992
        %v1160 = vmul.f32 %v978, %v996
        %1161 = vst [vmem:[%s175] sm:$0xff] %v1001
        %1162 = vst [vmem:[%s175 + $0x8] sm:$0xff] %v1002
        %1163 = vst [vmem:[%s175 + $0x10] sm:$0xff] %v1003
        %1164 = vst [vmem:[%s175 + $0x18] sm:$0xff] %v1004
        %1165 = vst [vmem:[%s175 + $0x20] sm:$0xff] %v1005
        %1166 = vst [vmem:[%s175 + $0x28] sm:$0xff] %v1006
        %1167 = vst [vmem:[%s175 + $0x30] sm:$0xff] %v1007
        %1168 = vst [vmem:[%s175 + $0x38] sm:$0xff] %v1008
        %1169 = vst [vmem:[%s175 + $0x40] sm:$0xff] %v1009
        %1170 = vst [vmem:[%s175 + $0x48] sm:$0xff] %v1010
        %1171 = vst [vmem:[%s175 + $0x50] sm:$0xff] %v1011
        %1172 = vst [vmem:[%s175 + $0x58] sm:$0xff] %v1012
        %1173 = vst [vmem:[%s175 + $0x60] sm:$0xff] %v1013
        %1174 = vst [vmem:[%s175 + $0x68] sm:$0xff] %v1014
        %1175 = vst [vmem:[%s175 + $0x70] sm:$0xff] %v1015
        %1176 = vst [vmem:[%s175 + $0x78] sm:$0xff] %v1016
        %1177 = vst [vmem:[%s175 + $0x80] sm:$0xff] %v1017
        %1178 = vst [vmem:[%s175 + $0x88] sm:$0xff] %v1018
        %1179 = vst [vmem:[%s175 + $0x90] sm:$0xff] %v1019
        %1180 = vst [vmem:[%s175 + $0x98] sm:$0xff] %v1020
        %1181 = vst [vmem:[%s175 + $0xa0] sm:$0xff] %v1021
        %1182 = vst [vmem:[%s175 + $0xa8] sm:$0xff] %v1022
        %1183 = vst [vmem:[%s175 + $0xb0] sm:$0xff] %v1023
        %1184 = vst [vmem:[%s175 + $0xb8] sm:$0xff] %v1024
        %1185 = vst [vmem:[%s175 + $0xc0] sm:$0xff] %v1025
        %1186 = vst [vmem:[%s175 + $0xc8] sm:$0xff] %v1026
        %1187 = vst [vmem:[%s175 + $0xd0] sm:$0xff] %v1027
        %1188 = vst [vmem:[%s175 + $0xd8] sm:$0xff] %v1028
        %1189 = vst [vmem:[%s175 + $0xe0] sm:$0xff] %v1029
        %1190 = vst [vmem:[%s175 + $0xe8] sm:$0xff] %v1030
        %1191 = vst [vmem:[%s175 + $0xf0] sm:$0xff] %v1031
        %1192 = vst [vmem:[%s175 + $0xf8] sm:$0xff] %v1032
        %1193 = vst [vmem:[%s175 + $0x100] sm:$0xff] %v1033
        %1194 = vst [vmem:[%s175 + $0x108] sm:$0xff] %v1034
        %1195 = vst [vmem:[%s175 + $0x110] sm:$0xff] %v1035
        %1196 = vst [vmem:[%s175 + $0x118] sm:$0xff] %v1036
        %1197 = vst [vmem:[%s175 + $0x120] sm:$0xff] %v1037
        %1198 = vst [vmem:[%s175 + $0x128] sm:$0xff] %v1038
        %1199 = vst [vmem:[%s175 + $0x130] sm:$0xff] %v1039
        %1200 = vst [vmem:[%s175 + $0x138] sm:$0xff] %v1040
        %1201 = vst [vmem:[%s175 + $0x140] sm:$0xff] %v1041
        %1202 = vst [vmem:[%s175 + $0x148] sm:$0xff] %v1042
        %1203 = vst [vmem:[%s175 + $0x150] sm:$0xff] %v1043
        %1204 = vst [vmem:[%s175 + $0x158] sm:$0xff] %v1044
        %1205 = vst [vmem:[%s175 + $0x160] sm:$0xff] %v1045
        %1206 = vst [vmem:[%s175 + $0x168] sm:$0xff] %v1046
        %1207 = vst [vmem:[%s175 + $0x170] sm:$0xff] %v1047
        %1208 = vst [vmem:[%s175 + $0x178] sm:$0xff] %v1048
        %1209 = vst [vmem:[%s175 + $0x180] sm:$0xff] %v1049
        %1210 = vst [vmem:[%s175 + $0x188] sm:$0xff] %v1050
        %1211 = vst [vmem:[%s175 + $0x190] sm:$0xff] %v1051
        %1212 = vst [vmem:[%s175 + $0x198] sm:$0xff] %v1052
        %1213 = vst [vmem:[%s175 + $0x1a0] sm:$0xff] %v1053
        %1214 = vst [vmem:[%s175 + $0x1a8] sm:$0xff] %v1054
        %1215 = vst [vmem:[%s175 + $0x1b0] sm:$0xff] %v1055
        %1216 = vst [vmem:[%s175 + $0x1b8] sm:$0xff] %v1056
        %1217 = vst [vmem:[%s175 + $0x1c0] sm:$0xff] %v1057
        %1218 = vst [vmem:[%s175 + $0x1c8] sm:$0xff] %v1058
        %1219 = vst [vmem:[%s175 + $0x1d0] sm:$0xff] %v1059
        %1220 = vst [vmem:[%s175 + $0x1d8] sm:$0xff] %v1060
        %1221 = vst [vmem:[%s175 + $0x1e0] sm:$0xff] %v1061
        %1222 = vst [vmem:[%s175 + $0x1e8] sm:$0xff] %v1062
        %1223 = vst [vmem:[%s175 + $0x1f0] sm:$0xff] %v1063
        %1224 = vst [vmem:[%s175 + $0x1f8] sm:$0xff] %v1064
        %1225 = vst [vmem:[%s175 + $0x200] sm:$0xff] %v1065
        %1226 = vst [vmem:[%s175 + $0x208] sm:$0xff] %v1066
        %1227 = vst [vmem:[%s175 + $0x210] sm:$0xff] %v1067
        %1228 = vst [vmem:[%s175 + $0x218] sm:$0xff] %v1068
        %1229 = vst [vmem:[%s175 + $0x220] sm:$0xff] %v1069
        %1230 = vst [vmem:[%s175 + $0x228] sm:$0xff] %v1070
        %1231 = vst [vmem:[%s175 + $0x230] sm:$0xff] %v1071
        %1232 = vst [vmem:[%s175 + $0x238] sm:$0xff] %v1072
        %1233 = vst [vmem:[%s175 + $0x240] sm:$0xff] %v1073
        %1234 = vst [vmem:[%s175 + $0x248] sm:$0xff] %v1074
        %1235 = vst [vmem:[%s175 + $0x250] sm:$0xff] %v1075
        %1236 = vst [vmem:[%s175 + $0x258] sm:$0xff] %v1076
        %1237 = vst [vmem:[%s175 + $0x260] sm:$0xff] %v1077
        %1238 = vst [vmem:[%s175 + $0x268] sm:$0xff] %v1078
        %1239 = vst [vmem:[%s175 + $0x270] sm:$0xff] %v1079
        %1240 = vst [vmem:[%s175 + $0x278] sm:$0xff] %v1080
        %1241 = vst [vmem:[%s175 + $0x280] sm:$0xff] %v1081
        %1242 = vst [vmem:[%s175 + $0x288] sm:$0xff] %v1082
        %1243 = vst [vmem:[%s175 + $0x290] sm:$0xff] %v1083
        %1244 = vst [vmem:[%s175 + $0x298] sm:$0xff] %v1084
        %1245 = vst [vmem:[%s175 + $0x2a0] sm:$0xff] %v1085
        %1246 = vst [vmem:[%s175 + $0x2a8] sm:$0xff] %v1086
        %1247 = vst [vmem:[%s175 + $0x2b0] sm:$0xff] %v1087
        %1248 = vst [vmem:[%s175 + $0x2b8] sm:$0xff] %v1088
        %1249 = vst [vmem:[%s175 + $0x2c0] sm:$0xff] %v1089
        %1250 = vst [vmem:[%s175 + $0x2c8] sm:$0xff] %v1090
        %1251 = vst [vmem:[%s175 + $0x2d0] sm:$0xff] %v1091
        %1252 = vst [vmem:[%s175 + $0x2d8] sm:$0xff] %v1092
        %1253 = vst [vmem:[%s175 + $0x2e0] sm:$0xff] %v1093
        %1254 = vst [vmem:[%s175 + $0x2e8] sm:$0xff] %v1094
        %1255 = vst [vmem:[%s175 + $0x2f0] sm:$0xff] %v1095
        %1256 = vst [vmem:[%s175 + $0x2f8] sm:$0xff] %v1096
        %1257 = vst [vmem:[%s175 + $0x300] sm:$0xff] %v1097
        %1258 = vst [vmem:[%s175 + $0x308] sm:$0xff] %v1098
        %1259 = vst [vmem:[%s175 + $0x310] sm:$0xff] %v1099
        %1260 = vst [vmem:[%s175 + $0x318] sm:$0xff] %v1100
        %1261 = vst [vmem:[%s175 + $0x320] sm:$0xff] %v1101
        %1262 = vst [vmem:[%s175 + $0x328] sm:$0xff] %v1102
        %1263 = vst [vmem:[%s175 + $0x330] sm:$0xff] %v1103
        %1264 = vst [vmem:[%s175 + $0x338] sm:$0xff] %v1104
        %1265 = vst [vmem:[%s175 + $0x340] sm:$0xff] %v1105
        %1266 = vst [vmem:[%s175 + $0x348] sm:$0xff] %v1106
        %1267 = vst [vmem:[%s175 + $0x350] sm:$0xff] %v1107
        %1268 = vst [vmem:[%s175 + $0x358] sm:$0xff] %v1108
        %1269 = vst [vmem:[%s175 + $0x360] sm:$0xff] %v1109
        %1270 = vst [vmem:[%s175 + $0x368] sm:$0xff] %v1110
        %1271 = vst [vmem:[%s175 + $0x370] sm:$0xff] %v1111
        %1272 = vst [vmem:[%s175 + $0x378] sm:$0xff] %v1112
        %1273 = vst [vmem:[%s175 + $0x380] sm:$0xff] %v1113
        %1274 = vst [vmem:[%s175 + $0x388] sm:$0xff] %v1114
        %1275 = vst [vmem:[%s175 + $0x390] sm:$0xff] %v1115
        %1276 = vst [vmem:[%s175 + $0x398] sm:$0xff] %v1116
        %1277 = vst [vmem:[%s175 + $0x3a0] sm:$0xff] %v1117
        %1278 = vst [vmem:[%s175 + $0x3a8] sm:$0xff] %v1118
        %1279 = vst [vmem:[%s175 + $0x3b0] sm:$0xff] %v1119
        %1280 = vst [vmem:[%s175 + $0x3b8] sm:$0xff] %v1120
        %1281 = vst [vmem:[%s175 + $0x3c0] sm:$0xff] %v1121
        %1282 = vst [vmem:[%s175 + $0x3c8] sm:$0xff] %v1122
        %1283 = vst [vmem:[%s175 + $0x3d0] sm:$0xff] %v1123
        %1284 = vst [vmem:[%s175 + $0x3d8] sm:$0xff] %v1124
        %1285 = vst [vmem:[%s175 + $0x3e0] sm:$0xff] %v1125
        %1286 = vst [vmem:[%s175 + $0x3e8] sm:$0xff] %v1126
        %1287 = vst [vmem:[%s175 + $0x3f0] sm:$0xff] %v1127
        %1288 = vst [vmem:[%s175 + $0x3f8] sm:$0xff] %v1128
        %1289 = vst [vmem:[%s175 + $0x400] sm:$0xff] %v1129
        %1290 = vst [vmem:[%s175 + $0x408] sm:$0xff] %v1130
        %1291 = vst [vmem:[%s175 + $0x410] sm:$0xff] %v1131
        %1292 = vst [vmem:[%s175 + $0x418] sm:$0xff] %v1132
        %1293 = vst [vmem:[%s175 + $0x420] sm:$0xff] %v1133
        %1294 = vst [vmem:[%s175 + $0x428] sm:$0xff] %v1134
        %1295 = vst [vmem:[%s175 + $0x430] sm:$0xff] %v1135
        %1296 = vst [vmem:[%s175 + $0x438] sm:$0xff] %v1136
        %1297 = vst [vmem:[%s175 + $0x440] sm:$0xff] %v1137
        %1298 = vst [vmem:[%s175 + $0x448] sm:$0xff] %v1138
        %1299 = vst [vmem:[%s175 + $0x450] sm:$0xff] %v1139
        %1300 = vst [vmem:[%s175 + $0x458] sm:$0xff] %v1140
        %1301 = vst [vmem:[%s175 + $0x460] sm:$0xff] %v1141
        %1302 = vst [vmem:[%s175 + $0x468] sm:$0xff] %v1142
        %1303 = vst [vmem:[%s175 + $0x470] sm:$0xff] %v1143
        %1304 = vst [vmem:[%s175 + $0x478] sm:$0xff] %v1144
        %1305 = vst [vmem:[%s175 + $0x480] sm:$0xff] %v1145
        %1306 = vst [vmem:[%s175 + $0x488] sm:$0xff] %v1146
        %1307 = vst [vmem:[%s175 + $0x490] sm:$0xff] %v1147
        %1308 = vst [vmem:[%s175 + $0x498] sm:$0xff] %v1148
        %1309 = vst [vmem:[%s175 + $0x4a0] sm:$0xff] %v1149
        %1310 = vst [vmem:[%s175 + $0x4a8] sm:$0xff] %v1150
        %1311 = vst [vmem:[%s175 + $0x4b0] sm:$0xff] %v1151
        %1312 = vst [vmem:[%s175 + $0x4b8] sm:$0xff] %v1152
        %1313 = vst [vmem:[%s175 + $0x4c0] sm:$0xff] %v1153
        %1314 = vst [vmem:[%s175 + $0x4c8] sm:$0xff] %v1154
        %1315 = vst [vmem:[%s175 + $0x4d0] sm:$0xff] %v1155
        %1316 = vst [vmem:[%s175 + $0x4d8] sm:$0xff] %v1156
        %1317 = vst [vmem:[%s175 + $0x4e0] sm:$0xff] %v1157
        %1318 = vst [vmem:[%s175 + $0x4e8] sm:$0xff] %v1158
        %1319 = vst [vmem:[%s175 + $0x4f0] sm:$0xff] %v1159
        %1320 = vst [vmem:[%s175 + $0x4f8] sm:$0xff] %v1160
        %s1321 = sand.u32 %s75, 1
        %s1322 = scalar_lea.sflag [#allocation4], %s1321
        %s1323 = sand.u32 %s75, 1
        %s1324 = smul.addr %s1323, 1280
        %s1325 = scalar_lea.vmem [#allocation7], %s1324
        // Predicated region
        $region37: #{tpu_custom_call.1} parent=27 // pred_check
          %p1326 = pneg %p85
        $region38: #{tpu_custom_call.1} parent=27 // pred_check_branch
          %1328 = sbr.rel (%p1326) target = $region40
        $region39: #{tpu_custom_call.1} parent=27 // pred_region
          %s1329 = smul.u32 40, %s20
          %s1331 = ssub.s32 20480, 20480
          %1332 = vsyncadd %s1322, %s1331
          %s1333 = smul.addr %s1329, 4
          %s1334 = smul.addr %s1333, 128
          %s1335 = scalar_lea.hbm %s2, %s1334
          %s1336 = sshll.u32 %s1325, 4
          %s1337 = int_to_ptr.vmem [resolvable:$true] %s1336
          %1342 = dma.vmem_to_hbm [thread:$0]  %s1337, 20480, %s1335, %s1322, 512, 512, 32
        $region40: #{tpu_custom_call.1} parent=27 // pred_fallthru
          _
      $region28: #{tpu_custom_call.1} parent=5 // pred_fallthru
        _
      %p1343 = scmp.le.s32.totalorder 2, %s15
      // Predicated region
      $region41: #{tpu_custom_call.1} parent=5 // pred_check
        %p1344 = pneg %p1343
      $region42: #{tpu_custom_call.1} parent=5 // pred_check_branch
        %1346 = sbr.rel (%p1344) target = $region44
      $region43: #{tpu_custom_call.1} parent=5 // pred_region
        %s1347 = ssub.s32 %s15, 2
        // Predicated region
        $region45: #{tpu_custom_call.1} parent=43 // pred_check
          %p1348 = pneg %p91
        $region46: #{tpu_custom_call.1} parent=43 // pred_check_branch
          %1350 = sbr.rel (%p1348) target = $region48
        $region47: #{tpu_custom_call.1} parent=43 // pred_region
          %s1351 = sand.u32 %s76, 1
          %s1352 = scalar_lea.sflag [#allocation4], %s1351
          %s1353 = sand.u32 %s76, 1
          %s1354 = smul.addr %s1353, 1280
          %s1355 = scalar_lea.vmem [#allocation7], %s1354
          %1356 = dma.done %s1352, 20480
        $region48: #{tpu_custom_call.1} parent=43 // pred_fallthru
          _
      $region44: #{tpu_custom_call.1} parent=5 // pred_fallthru
        _
    $region6: #{tpu_custom_call.1} parent=1 // loop_footer
      %s19 = sadd.s32 1, %s15
    $region7: #{tpu_custom_call.1} parent=1 // loop_footer_branch
      %14 = sbr.rel target = $region3
    $region8: #{tpu_custom_call.1} parent=1 // loop_exit
      _
    %1357 = vsyncpa [#allocation3], 1
    %s1358 = scalar_lea.sflag [#allocation3], 1
    %1359 = vsyncpa %s1358, 1
    %1360 = vsyncpa [#allocation6], 1
    %1361 = vsyncpa [#allocation4], 1
    %s1362 = scalar_lea.sflag [#allocation4], 1
    %1363 = vsyncpa %s1362, 1

</llo_original>
